<compile_context>
chip_gen: v6e
topology: v6e:2x2x1
jax: 0.10.0
libtpu: 0.0.40
codegen_flags: <defaults>
</compile_context>

<pallas_src>
import jax
import jax.numpy as jnp
from jax.experimental import pallas as pl
from jax.experimental.pallas import tpu as pltpu


def ppi_kernel(p1_ref, p2_ref, w_ref, b_ref, o_ref):
    tb = p1_ref.shape[0]
    # Fuse the two fc() matmuls: stack the p1/p2 tiles along rows so the shared
    # (A, H) weight goes through the MXU once per grid step.
    lhs = jnp.concatenate([p1_ref[...], p2_ref[...]], axis=0)          # (2*TB, A) bf16
    x = jnp.dot(lhs, w_ref[...], preferred_element_type=jnp.float32)  # (2*TB, H) f32
    x = x + b_ref[...]                                                 # bias broadcast once (f32)
    x1 = x[:tb, :]
    x2 = x[tb:, :]
    s = jnp.sum(x1 * x2, axis=1, keepdims=True)                        # (TB, 1) f32
    # sigmoid(s) = 1 / (1 + exp(-s)); exp and the approximate reciprocal both
    # ride the EUP slot, keeping the VALU free.
    sig = pl.reciprocal(1.0 + jnp.exp(-s), approx=True)
    o_ref[...] = sig.astype(o_ref.dtype)


def ppi_forward(annots_p1, annots_p2, w_fc_t, b_fc, *, block_b=512,
                compute_dtype=jnp.bfloat16,
                vmem_limit_bytes=48 * 1024 * 1024):
    """annots_p1/p2: (B, A); w_fc_t: (A, H) = fc.weight.T; b_fc: (H,) -> (B, 1) f32."""
    B, A = annots_p1.shape
    A2, H = w_fc_t.shape
    assert A == A2

    # bf16 for the MXU operands only (f32 accumulation via preferred_element_type);
    # everything elementwise downstream stays f32.
    p1 = annots_p1.astype(compute_dtype)
    p2 = annots_p2.astype(compute_dtype)
    w = w_fc_t.astype(compute_dtype)
    b = jnp.asarray(b_fc, jnp.float32).reshape(1, H)

    # Batch tile: large enough to amortize per-step overhead and keep the DMA
    # pipeline busy, small enough to fit comfortably in v7x's 64 MiB VMEM with
    # double-buffered inputs and the (2*TB, H) f32 intermediate.
    if B <= block_b:
        tb = B                      # single full-extent block
    else:
        tb = block_b                # multiple of 8/16 -> aligned sublane tiles
    grid = (pl.cdiv(B, tb),)

    return pl.pallas_call(
        ppi_kernel,
        out_shape=jax.ShapeDtypeStruct((B, 1), jnp.float32),
        grid=grid,
        in_specs=[
            pl.BlockSpec((tb, A), lambda i: (i, 0)),   # p1 tile, pipelined over batch
            pl.BlockSpec((tb, A), lambda i: (i, 0)),   # p2 tile, pipelined over batch
            pl.BlockSpec((A, H), lambda i: (0, 0)),    # weight: VMEM-resident
            pl.BlockSpec((1, H), lambda i: (0, 0)),    # bias:   VMEM-resident
        ],
        out_specs=pl.BlockSpec((tb, 1), lambda i: (i, 0)),
        compiler_params=pltpu.CompilerParams(
            dimension_semantics=("parallel",),          # 2x on v7x (2 TCs); no-op elsewhere
            vmem_limit_bytes=vmem_limit_bytes,
        ),
    )(p1, p2, w, b)


def reference_forward(annots_p1, annots_p2, w_fc_t, b_fc,
                      compute_dtype=jnp.bfloat16):
    """Pure-JAX reference mirroring the kernel's bf16-matmul / f32-accumulate path."""
    b = jnp.asarray(b_fc, jnp.float32).reshape(1, -1)
    x1 = jnp.dot(annots_p1.astype(compute_dtype), w_fc_t.astype(compute_dtype),
                 preferred_element_type=jnp.float32) + b
    x2 = jnp.dot(annots_p2.astype(compute_dtype), w_fc_t.astype(compute_dtype),
                 preferred_element_type=jnp.float32) + b
    return jax.nn.sigmoid(jnp.sum(x1 * x2, axis=1, keepdims=True))


if __name__ == "__main__":
    # Small shapes consistent with the module (annots_length=32, hidden_dim=128);
    # B=256 with block_b=128 exercises a 2-step pipelined grid.
    B = 256          # batch
    A = 32           # annots_length
    H = 128          # hidden_dim

    key = jax.random.PRNGKey(0)
    k1, k2, kw, kb, kow, kob = jax.random.split(key, 6)

    annots_p1 = jax.random.normal(k1, (B, A), dtype=jnp.float32)
    annots_p2 = jax.random.normal(k2, (B, A), dtype=jnp.float32)

    # Deterministic parameter init (PyTorch nn.Linear-style uniform bounds).
    bound_fc = 1.0 / (A ** 0.5)
    w_fc = jax.random.uniform(kw, (H, A), minval=-bound_fc, maxval=bound_fc,
                              dtype=jnp.float32)        # PyTorch layout (out, in)
    b_fc = jax.random.uniform(kb, (H,), minval=-bound_fc, maxval=bound_fc,
                              dtype=jnp.float32)
    # self.out exists in __init__ but is unused in forward; init for parity only.
    bound_out = 1.0 / (H ** 0.5)
    _w_out = jax.random.uniform(kow, (1, H), minval=-bound_out, maxval=bound_out,
                                dtype=jnp.float32)
    _b_out = jax.random.uniform(kob, (1,), minval=-bound_out, maxval=bound_out,
                                dtype=jnp.float32)

    w_fc_t = w_fc.T                    # (A, H) for the kernel

    out = ppi_forward(annots_p1, annots_p2, w_fc_t, b_fc, block_b=128)
    out = jax.block_until_ready(out)

    ref = reference_forward(annots_p1, annots_p2, w_fc_t, b_fc)
    assert out.shape == (B, 1)
    assert jnp.allclose(out, ref, atol=3e-3, rtol=3e-3), (
        "max abs err:", float(jnp.max(jnp.abs(out - ref))))

    print("KERNEL_OK")
</pallas_src>

<mosaic_0001>
module attributes {stable_mosaic.version = 11 : i64} {
  func.func @ppi_kernel(%arg0: i32, %arg1: memref<128x32xbf16, #tpu.memory_space<vmem>>, %arg2: memref<128x32xbf16, #tpu.memory_space<vmem>>, %arg3: memref<32x128xbf16, #tpu.memory_space<vmem>>, %arg4: memref<1x128xf32, #tpu.memory_space<vmem>>, %arg5: memref<128x1xf32, #tpu.memory_space<vmem>>) attributes {dimension_semantics = [#tpu.dimension_semantics<parallel>], iteration_bounds = array<i64: 2>, scalar_prefetch = 0 : i64, scratch_operands = 0 : i64, tpu.core_type = #tpu.core_type<tc>, window_params = [{transform_indices = @transform_0, window_bounds = array<i64: 128, 32>}, {transform_indices = @transform_1, window_bounds = array<i64: 128, 32>}, {pipeline_mode = #tpu.pipeline_mode<synchronous>, transform_indices = @transform_2, window_bounds = array<i64: 32, 128>}, {pipeline_mode = #tpu.pipeline_mode<synchronous>, transform_indices = @transform_3, window_bounds = array<i64: 1, 128>}, {transform_indices = @transform_4, window_bounds = array<i64: 128, 1>}]} {
    %c0 = arith.constant 0 : index
    %c0_0 = arith.constant 0 : index
    %0 = vector.load %arg1[%c0, %c0_0] : memref<128x32xbf16, #tpu.memory_space<vmem>>, vector<128x32xbf16>
    %c0_1 = arith.constant 0 : index
    %c0_2 = arith.constant 0 : index
    %1 = vector.load %arg2[%c0_1, %c0_2] : memref<128x32xbf16, #tpu.memory_space<vmem>>, vector<128x32xbf16>
    %2 = tpu.concatenate %0, %1 in 0 : vector<128x32xbf16>, vector<128x32xbf16> -> vector<256x32xbf16>
    %c0_3 = arith.constant 0 : index
    %c0_4 = arith.constant 0 : index
    %3 = vector.load %arg3[%c0_3, %c0_4] : memref<32x128xbf16, #tpu.memory_space<vmem>>, vector<32x128xbf16>
    %cst = arith.constant dense<0.000000e+00> : vector<256x128xf32>
    %4 = tpu.matmul %2, %3, %cst {dimension_numbers = #tpu.dot_dimension_numbers<[1], [0], [0], [1], [0, 0, 1, 1], [], []>} : vector<256x32xbf16>, vector<32x128xbf16>, vector<256x128xf32> -> vector<256x128xf32>
    %c0_5 = arith.constant 0 : index
    %c0_6 = arith.constant 0 : index
    %5 = vector.load %arg4[%c0_5, %c0_6] : memref<1x128xf32, #tpu.memory_space<vmem>>, vector<1x128xf32>
    %6 = vector.broadcast %5 : vector<1x128xf32> to vector<256x128xf32>
    %7 = arith.addf %4, %6 : vector<256x128xf32>
    %8 = vector.extract_strided_slice %7 {offsets = [0, 0], sizes = [128, 128], strides = [1, 1]} : vector<256x128xf32> to vector<128x128xf32>
    %9 = vector.extract_strided_slice %7 {offsets = [128, 0], sizes = [128, 128], strides = [1, 1]} : vector<256x128xf32> to vector<128x128xf32>
    %10 = arith.mulf %8, %9 : vector<128x128xf32>
    %cst_7 = arith.constant dense<0.000000e+00> : vector<128xf32>
    %11 = vector.multi_reduction <add>, %10, %cst_7 [1] : vector<128x128xf32> to vector<128xf32>
    %12 = vector.shape_cast %11 : vector<128xf32> to vector<128x1xf32>
    %cst_8 = arith.constant 0.000000e+00 : f32
    %13 = vector.broadcast %cst_8 : f32 to vector<128x1xf32>
    %14 = arith.subf %13, %12 : vector<128x1xf32>
    %15 = math.exp %14 : vector<128x1xf32>
    %cst_9 = arith.constant 1.000000e+00 : f32
    %16 = vector.broadcast %cst_9 : f32 to vector<128x1xf32>
    %17 = arith.addf %16, %15 : vector<128x1xf32>
    %18 = tpu.reciprocal %17 {approx = true} : vector<128x1xf32> -> vector<128x1xf32>
    %c0_10 = arith.constant 0 : index
    %c0_11 = arith.constant 0 : index
    %19 = vector.load %arg5[%c0_10, %c0_11] : memref<128x1xf32, #tpu.memory_space<vmem>>, vector<128x1xf32>
    tpu.vector_store %arg5[%c0_10, %c0_11], %18 {strides = array<i32>} : memref<128x1xf32, #tpu.memory_space<vmem>>, vector<128x1xf32>,
    return
  }
  func.func @transform_0(%arg0: i32) -> (i32, i32) {
    %c0_i32 = arith.constant 0 : i32
    %c0_i32_0 = arith.constant 0 : i32
    return %arg0, %c0_i32 : i32, i32
  }
  func.func @transform_1(%arg0: i32) -> (i32, i32) {
    %c0_i32 = arith.constant 0 : i32
    %c0_i32_0 = arith.constant 0 : i32
    return %arg0, %c0_i32 : i32, i32
  }
  func.func @transform_2(%arg0: i32) -> (i32, i32) {
    %c0_i32 = arith.constant 0 : i32
    %c0_i32_0 = arith.constant 0 : i32
    %c0_i32_1 = arith.constant 0 : i32
    return %c0_i32, %c0_i32_0 : i32, i32
  }
  func.func @transform_3(%arg0: i32) -> (i32, i32) {
    %c0_i32 = arith.constant 0 : i32
    %c0_i32_0 = arith.constant 0 : i32
    %c0_i32_1 = arith.constant 0 : i32
    return %c0_i32, %c0_i32_0 : i32, i32
  }
  func.func @transform_4(%arg0: i32) -> (i32, i32) {
    %c0_i32 = arith.constant 0 : i32
    %c0_i32_0 = arith.constant 0 : i32
    return %arg0, %c0_i32 : i32, i32
  }
}

</mosaic_0001>

<llo_original>
// kernel: tpu_custom_call.1
$region0: #{tpu_custom_call.1}
  #allocation0 [shape = 'u32[]', space=smem, size = 0x4, offset = 0x4, fixed_abs, tag = 'smem constant byte address 0x4 - core index']
  #allocation1 [shape = 'u32[144,128]{1,0:T(1,128)}', space=vmem, size = 0x12000, scoped, tag = 'internal scratch']
  %s0 = inlined_call_operand.vmem [shape: bf16[256,32], index: 0, kind: input, shape index: {}]
  %s1 = inlined_call_operand.vmem [shape: bf16[256,32], index: 1, kind: input, shape index: {}]
  %s2 = inlined_call_operand.vmem [shape: bf16[32,128], index: 2, kind: input, shape index: {}]
  %s3 = inlined_call_operand.vmem [shape: f32[1,128], index: 3, kind: input, shape index: {}]
  %s4 = inlined_call_operand.vmem [shape: f32[256,1], index: 4, kind: output, shape index: {}]
  %s5 = sld [smem:[#allocation0]]
  $region49: #{tpu_custom_call.1} parent=0
    _
  %s7 = ssub.s32 1, %s5
  %s8 = scalar_select 0, %s7, %s5
  loop: start=0, step=1, limit=4
  $region2: #{tpu_custom_call.1} parent=0 // loop_pre_header
    _
  $region3: #{tpu_custom_call.1} parent=0 // loop_header
    %s10 = sphi 0, %s14
    %p11 = scmp.ge.s32.totalorder %s10, 4
    %s20 = sphi 0, %s22
    %s23 = sphi 0, %s20
    %s24 = sphi 0, %s23
    %s40 = sphi 0, %s24
    %s46 = sphi 0, %s48
    %s49 = sphi 0, %s46
    %s50 = sphi 0, %s49
    %s66 = sphi 0, %s50
    %s70 = sphi 0, %s70
    %s72 = sphi 0, %s70
    %s73 = sphi 0, %s72
    %s87 = sphi 0, %s73
    %s91 = sphi 0, %s91
    %s93 = sphi 0, %s91
    %s94 = sphi 0, %s93
    %s108 = sphi 0, %s94
    %s114 = sphi 0, %s116
    %s117 = sphi 0, %s114
    %s118 = sphi 0, %s117
    %s134 = sphi 0, %s118
  $region4: #{tpu_custom_call.1} parent=0 // loop_header_branch
    %13 = sbr.rel (%p11) target = $region8
  $region5: #{tpu_custom_call.1} parent=0 // loop_body
    %s15 = ssub.s32 %s10, 1
    %s16 = ssub.s32 %s10, 2
    %s17 = sadd.s32 %s10, 1
    %s18 = ssub.s32 %s10, %s17
    %p19 = scmp.eq.s32.totalorder %s18, 0
    %s21 = sadd.s32 %s20, 1
    %s22 = scalar_select %p19, %s20, %s21
    %p25 = pneg %p19
    %p26 = scmp.eq.s32.totalorder %s10, 1
    %p27 = por %p25, %p26
    %p28 = scmp.ne.s32.totalorder %s20, %s23
    %p29 = scmp.eq.s32.totalorder %s10, 0
    %p30 = por %p28, %p29
    %p31 = scmp.ne.s32.totalorder %s20, %s23
    %p32 = scmp.eq.s32.totalorder %s15, 1
    %p33 = por %p31, %p32
    %p34 = scmp.ne.s32.totalorder %s23, %s24
    %p35 = scmp.eq.s32.totalorder %s15, 0
    %p36 = por %p34, %p35
    %p37 = scmp.ne.s32.totalorder %s23, %s24
    %p38 = scmp.eq.s32.totalorder %s16, 1
    %p39 = por %p37, %p38
    %p41 = scmp.ne.s32.totalorder %s24, %s40
    %p42 = scmp.eq.s32.totalorder %s16, 0
    %p43 = por %p41, %p42
    %s44 = ssub.s32 %s10, %s17
    %p45 = scmp.eq.s32.totalorder %s44, 0
    %s47 = sadd.s32 %s46, 1
    %s48 = scalar_select %p45, %s46, %s47
    %p51 = pneg %p45
    %p52 = scmp.eq.s32.totalorder %s10, 1
    %p53 = por %p51, %p52
    %p54 = scmp.ne.s32.totalorder %s46, %s49
    %p55 = scmp.eq.s32.totalorder %s10, 0
    %p56 = por %p54, %p55
    %p57 = scmp.ne.s32.totalorder %s46, %s49
    %p58 = scmp.eq.s32.totalorder %s15, 1
    %p59 = por %p57, %p58
    %p60 = scmp.ne.s32.totalorder %s49, %s50
    %p61 = scmp.eq.s32.totalorder %s15, 0
    %p62 = por %p60, %p61
    %p63 = scmp.ne.s32.totalorder %s49, %s50
    %p64 = scmp.eq.s32.totalorder %s16, 1
    %p65 = por %p63, %p64
    %p67 = scmp.ne.s32.totalorder %s50, %s66
    %p68 = scmp.eq.s32.totalorder %s16, 0
    %p69 = por %p67, %p68
    %s71 = sadd.s32 %s70, 1
    %p74 = scmp.eq.s32.totalorder %s10, 1
    %p75 = scmp.ne.s32.totalorder %s70, %s72
    %p76 = scmp.eq.s32.totalorder %s10, 0
    %p77 = por %p75, %p76
    %p78 = scmp.ne.s32.totalorder %s70, %s72
    %p79 = scmp.eq.s32.totalorder %s15, 1
    %p80 = por %p78, %p79
    %p81 = scmp.ne.s32.totalorder %s72, %s73
    %p82 = scmp.eq.s32.totalorder %s15, 0
    %p83 = por %p81, %p82
    %p84 = scmp.ne.s32.totalorder %s72, %s73
    %p85 = scmp.eq.s32.totalorder %s16, 1
    %p86 = por %p84, %p85
    %p88 = scmp.ne.s32.totalorder %s73, %s87
    %p89 = scmp.eq.s32.totalorder %s16, 0
    %p90 = por %p88, %p89
    %s92 = sadd.s32 %s91, 1
    %p95 = scmp.eq.s32.totalorder %s10, 1
    %p96 = scmp.ne.s32.totalorder %s91, %s93
    %p97 = scmp.eq.s32.totalorder %s10, 0
    %p98 = por %p96, %p97
    %p99 = scmp.ne.s32.totalorder %s91, %s93
    %p100 = scmp.eq.s32.totalorder %s15, 1
    %p101 = por %p99, %p100
    %p102 = scmp.ne.s32.totalorder %s93, %s94
    %p103 = scmp.eq.s32.totalorder %s15, 0
    %p104 = por %p102, %p103
    %p105 = scmp.ne.s32.totalorder %s93, %s94
    %p106 = scmp.eq.s32.totalorder %s16, 1
    %p107 = por %p105, %p106
    %p109 = scmp.ne.s32.totalorder %s94, %s108
    %p110 = scmp.eq.s32.totalorder %s16, 0
    %p111 = por %p109, %p110
    %s112 = ssub.s32 %s10, %s17
    %p113 = scmp.eq.s32.totalorder %s112, 0
    %s115 = sadd.s32 %s114, 1
    %s116 = scalar_select %p113, %s114, %s115
    %p119 = pneg %p113
    %p120 = scmp.eq.s32.totalorder %s10, 1
    %p121 = por %p119, %p120
    %p122 = scmp.ne.s32.totalorder %s114, %s117
    %p123 = scmp.eq.s32.totalorder %s10, 0
    %p124 = por %p122, %p123
    %p125 = scmp.ne.s32.totalorder %s114, %s117
    %p126 = scmp.eq.s32.totalorder %s15, 1
    %p127 = por %p125, %p126
    %p128 = scmp.ne.s32.totalorder %s117, %s118
    %p129 = scmp.eq.s32.totalorder %s15, 0
    %p130 = por %p128, %p129
    %p131 = scmp.ne.s32.totalorder %s117, %s118
    %p132 = scmp.eq.s32.totalorder %s16, 1
    %p133 = por %p131, %p132
    %p135 = scmp.ne.s32.totalorder %s118, %s134
    %p136 = scmp.eq.s32.totalorder %s16, 0
    %p137 = por %p135, %p136
    %p138 = scmp.le.s32.totalorder 1, %s10
    %p139 = scmp.lt.s32.totalorder %s10, 3
    %p140 = pnand %p138, %p139
    %p141 = pneg %p140
    // Predicated region
    $region9: #{tpu_custom_call.1} parent=5 // pred_check
      _
    $region10: #{tpu_custom_call.1} parent=5 // pred_check_branch
      %143 = sbr.rel (%p140) target = $region12
    $region11: #{tpu_custom_call.1} parent=5 // pred_region
      %s144 = ssub.s32 %s10, 1
      // Predicated region
      $region13: #{tpu_custom_call.1} parent=11 // pred_check
        %p145 = pneg %p83
      $region14: #{tpu_custom_call.1} parent=11 // pred_check_branch
        %147 = sbr.rel (%p145) target = $region16
      $region15: #{tpu_custom_call.1} parent=11 // pred_region
        _
      $region16: #{tpu_custom_call.1} parent=11 // pred_fallthru
        _
      // Predicated region
      $region17: #{tpu_custom_call.1} parent=11 // pred_check
        %p148 = pneg %p104
      $region18: #{tpu_custom_call.1} parent=11 // pred_check_branch
        %150 = sbr.rel (%p148) target = $region20
      $region19: #{tpu_custom_call.1} parent=11 // pred_region
        _
      $region20: #{tpu_custom_call.1} parent=11 // pred_fallthru
        _
    $region12: #{tpu_custom_call.1} parent=5 // pred_fallthru
      _
    %p151 = scmp.lt.s32.totalorder %s10, 2
    // Predicated region
    $region21: #{tpu_custom_call.1} parent=5 // pred_check
      %p152 = pneg %p151
    $region22: #{tpu_custom_call.1} parent=5 // pred_check_branch
      %154 = sbr.rel (%p152) target = $region24
    $region23: #{tpu_custom_call.1} parent=5 // pred_region
      // Predicated region
      $region25: #{tpu_custom_call.1} parent=23 // pred_check
        %p155 = pneg %p30
      $region26: #{tpu_custom_call.1} parent=23 // pred_check_branch
        %157 = sbr.rel (%p155) target = $region28
      $region27: #{tpu_custom_call.1} parent=23 // pred_region
        %s158 = smul.u32 16, %s10
        %p159 = scmp.lt.s32.totalorder %s158, 31
        %s160 = scalar_select %p159, %s158, 31
        %s161 = smul.addr %s160, 4
        %s162 = scalar_lea.vmem %s0, %s161
        %s163 = smul.u32 16, %s10
      $region28: #{tpu_custom_call.1} parent=23 // pred_fallthru
        _
      // Predicated region
      $region29: #{tpu_custom_call.1} parent=23 // pred_check
        %p164 = pneg %p56
      $region30: #{tpu_custom_call.1} parent=23 // pred_check_branch
        %166 = sbr.rel (%p164) target = $region32
      $region31: #{tpu_custom_call.1} parent=23 // pred_region
        %s167 = smul.u32 16, %s10
        %p168 = scmp.lt.s32.totalorder %s167, 31
        %s169 = scalar_select %p168, %s167, 31
        %s170 = smul.addr %s169, 4
        %s171 = scalar_lea.vmem %s1, %s170
        %s172 = smul.u32 16, %s10
      $region32: #{tpu_custom_call.1} parent=23 // pred_fallthru
        _
    $region24: #{tpu_custom_call.1} parent=5 // pred_fallthru
      _
    %p173 = scmp.le.s32.totalorder 1, %s10
    %p174 = scmp.lt.s32.totalorder %s10, 3
    %p175 = pnand %p173, %p174
    %p176 = pneg %p175
    // Predicated region
    $region33: #{tpu_custom_call.1} parent=5 // pred_check
      _
    $region34: #{tpu_custom_call.1} parent=5 // pred_check_branch
      %178 = sbr.rel (%p175) target = $region36
    $region35: #{tpu_custom_call.1} parent=5 // pred_region
      %s179 = ssub.s32 %s10, 1
      %s180 = smul.u32 16, %s15
      %p181 = scmp.lt.s32.totalorder %s180, 31
      %s182 = scalar_select %p181, %s180, 31
      %s183 = smul.addr %s182, 4
      %s184 = scalar_lea.vmem %s0, %s183
      %p185 = pneg %p36
      %p186 = pneg %p33
      %s187 = smul.u32 16, %s15
      %p188 = scmp.lt.s32.totalorder %s187, 31
      %s189 = scalar_select %p188, %s187, 31
      %s190 = smul.addr %s189, 4
      %s191 = scalar_lea.vmem %s1, %s190
      %p192 = pneg %p62
      %p193 = pneg %p59
      %p194 = pneg %p83
      %p195 = pneg %p80
      %p196 = pneg %p104
      %p197 = pneg %p101
      %p198 = pneg %p130
      %p199 = pneg %p127
      %s200 = smul.u32 16, %s15
      %p201 = scmp.lt.s32.totalorder %s200, 31
      %s202 = scalar_select %p201, %s200, 31
      %s203 = smul.addr %s202, 8
      %s204 = scalar_lea.vmem %s4, %s203
      %s205 = smul.u32 16, %s15
      %p206 = scmp.lt.s32.totalorder %s205, 31
      %s207 = scalar_select %p206, %s205, 31
      %s208 = smul.addr %s207, 4
      %s209 = scalar_lea.vmem %s0, %s208
      %s210 = smul.u32 16, %s15
      %s211 = smul.u32 16, %s15
      %p212 = scmp.lt.s32.totalorder %s211, 31
      %s213 = scalar_select %p212, %s211, 31
      %s214 = smul.addr %s213, 4
      %s215 = scalar_lea.vmem %s1, %s214
      %s216 = smul.u32 16, %s15
      %s217 = smul.u32 16, %s15
      %p218 = scmp.lt.s32.totalorder %s217, 31
      %s219 = scalar_select %p218, %s217, 31
      %s220 = smul.addr %s219, 8
      %s221 = scalar_lea.vmem %s4, %s220
      %s222 = smul.u32 16, %s15
      %v224 = vld [vmem:[%s209] sm:$0xf]
      %v225 = vld [vmem:[%s209 + $0x4] sm:$0xf]
      %v226 = vld [vmem:[%s209 + $0x8] sm:$0xf]
      %v227 = vld [vmem:[%s209 + $0xc] sm:$0xf]
      %v228 = vld [vmem:[%s209 + $0x10] sm:$0xf]
      %v229 = vld [vmem:[%s209 + $0x14] sm:$0xf]
      %v230 = vld [vmem:[%s209 + $0x18] sm:$0xf]
      %v231 = vld [vmem:[%s209 + $0x1c] sm:$0xf]
      %v232 = vld [vmem:[%s209 + $0x20] sm:$0xf]
      %v233 = vld [vmem:[%s209 + $0x24] sm:$0xf]
      %v234 = vld [vmem:[%s209 + $0x28] sm:$0xf]
      %v235 = vld [vmem:[%s209 + $0x2c] sm:$0xf]
      %v236 = vld [vmem:[%s209 + $0x30] sm:$0xf]
      %v237 = vld [vmem:[%s209 + $0x34] sm:$0xf]
      %v238 = vld [vmem:[%s209 + $0x38] sm:$0xf]
      %v239 = vld [vmem:[%s209 + $0x3c] sm:$0xf]
      %v240 = vld [vmem:[%s215] sm:$0xf]
      %v241 = vld [vmem:[%s215 + $0x4] sm:$0xf]
      %v242 = vld [vmem:[%s215 + $0x8] sm:$0xf]
      %v243 = vld [vmem:[%s215 + $0xc] sm:$0xf]
      %v244 = vld [vmem:[%s215 + $0x10] sm:$0xf]
      %v245 = vld [vmem:[%s215 + $0x14] sm:$0xf]
      %v246 = vld [vmem:[%s215 + $0x18] sm:$0xf]
      %v247 = vld [vmem:[%s215 + $0x1c] sm:$0xf]
      %v248 = vld [vmem:[%s215 + $0x20] sm:$0xf]
      %v249 = vld [vmem:[%s215 + $0x24] sm:$0xf]
      %v250 = vld [vmem:[%s215 + $0x28] sm:$0xf]
      %v251 = vld [vmem:[%s215 + $0x2c] sm:$0xf]
      %v252 = vld [vmem:[%s215 + $0x30] sm:$0xf]
      %v253 = vld [vmem:[%s215 + $0x34] sm:$0xf]
      %v254 = vld [vmem:[%s215 + $0x38] sm:$0xf]
      %v255 = vld [vmem:[%s215 + $0x3c] sm:$0xf]
      %v272 = vunpack.c.l.b16 %v224
      %v273 = vunpack.c.l.b16 %v225
      %v274 = vunpack.c.l.b16 %v226
      %v275 = vunpack.c.l.b16 %v227
      %v276 = vunpack.c.l.b16 %v228
      %v277 = vunpack.c.l.b16 %v229
      %v278 = vunpack.c.l.b16 %v230
      %v279 = vunpack.c.l.b16 %v231
      %v280 = vunpack.c.l.b16 %v232
      %v281 = vunpack.c.l.b16 %v233
      %v282 = vunpack.c.l.b16 %v234
      %v283 = vunpack.c.l.b16 %v235
      %v284 = vunpack.c.l.b16 %v236
      %v285 = vunpack.c.l.b16 %v237
      %v286 = vunpack.c.l.b16 %v238
      %v287 = vunpack.c.l.b16 %v239
      %v288 = vpack.c.b16 %v273, %v272
      %v289 = vpack.c.b16 %v275, %v274
      %v290 = vpack.c.b16 %v277, %v276
      %v291 = vpack.c.b16 %v279, %v278
      %v292 = vpack.c.b16 %v281, %v280
      %v293 = vpack.c.b16 %v283, %v282
      %v294 = vpack.c.b16 %v285, %v284
      %v295 = vpack.c.b16 %v287, %v286
      %v312 = vunpack.c.l.b16 %v240
      %v313 = vunpack.c.l.b16 %v241
      %v314 = vunpack.c.l.b16 %v242
      %v315 = vunpack.c.l.b16 %v243
      %v316 = vunpack.c.l.b16 %v244
      %v317 = vunpack.c.l.b16 %v245
      %v318 = vunpack.c.l.b16 %v246
      %v319 = vunpack.c.l.b16 %v247
      %v320 = vunpack.c.l.b16 %v248
      %v321 = vunpack.c.l.b16 %v249
      %v322 = vunpack.c.l.b16 %v250
      %v323 = vunpack.c.l.b16 %v251
      %v324 = vunpack.c.l.b16 %v252
      %v325 = vunpack.c.l.b16 %v253
      %v326 = vunpack.c.l.b16 %v254
      %v327 = vunpack.c.l.b16 %v255
      %v328 = vpack.c.b16 %v313, %v312
      %v329 = vpack.c.b16 %v315, %v314
      %v330 = vpack.c.b16 %v317, %v316
      %v331 = vpack.c.b16 %v319, %v318
      %v332 = vpack.c.b16 %v321, %v320
      %v333 = vpack.c.b16 %v323, %v322
      %v334 = vpack.c.b16 %v325, %v324
      %v335 = vpack.c.b16 %v327, %v326
      %v336 = vld [vmem:[%s2] sm:$0xf]
      %v337 = vld [vmem:[%s2 + $0x4] sm:$0xf]
      %v338 = vld [vmem:[%s2 + $0x8] sm:$0xf]
      %v339 = vld [vmem:[%s2 + $0xc] sm:$0xf]
      %v340 = vld [vmem:[%s3] sm:$0x1]
      %v342 = vlaneseq
      %v343 = vshrl.u32 %v342, 7
      %v344 = vsub.s32 0, %v343
      %v345 = vrot.slane %v340, %v344
      %v351 = vunpack.c.l.b16 %v336
      %v352 = vunpack.c.l.b16 %v337
      %v353 = vunpack.c.l.b16 %v338
      %v354 = vunpack.c.l.b16 %v339
      %v355 = vpack.c.b16 %v352, %v351
      %v356 = vpack.c.b16 %v354, %v353
      %vm359 = vcmask 261120
      %v361 = vsel %vm359, %v288, 0
      %v364 = vsel %vm359, %v289, 0
      %v367 = vsel %vm359, %v290, 0
      %v370 = vsel %vm359, %v291, 0
      %v373 = vsel %vm359, %v292, 0
      %v376 = vsel %vm359, %v293, 0
      %v379 = vsel %vm359, %v294, 0
      %v382 = vsel %vm359, %v295, 0
      %v385 = vsel %vm359, %v328, 0
      %v388 = vsel %vm359, %v329, 0
      %v391 = vsel %vm359, %v330, 0
      %v394 = vsel %vm359, %v331, 0
      %v397 = vsel %vm359, %v332, 0
      %v400 = vsel %vm359, %v333, 0
      %v403 = vsel %vm359, %v334, 0
      %v406 = vsel %vm359, %v335, 0
      %408 = vmatprep.subr.bf16.mxu0 0
      %409 = vmatpush1.bf16.msra.mxu0 0
      %410 = vmatprep.subr.bf16.mxu0 0
      %411 = vmatpush1.bf16.msra.mxu0 0
      %412 = vmatprep.subr.bf16.mxu0 0
      %413 = vmatpush1.bf16.msra.mxu0 0
      %414 = vmatprep.subr.bf16.mxu0 0
      %415 = vmatpush1.bf16.msra.mxu0 0
      %416 = vmatprep.subr.bf16.mxu0 0
      %417 = vmatpush1.bf16.msra.mxu0 0
      %418 = vmatprep.subr.bf16.mxu0 0
      %419 = vmatpush1.bf16.msra.mxu0 0
      %420 = vmatprep.subr.bf16.mxu0 0
      %421 = vmatpush1.bf16.msra.mxu0 %v356
      %422 = vmatprep.subr.bf16.mxu0 0
      %423 = vmatpush1.bf16.msra.mxu0 %v355
      %424 = vmatprep.subr.bf16.mxu0 0
      %425 = vmatpush2.bf16.msra.mxu0 0
      %426 = vmatprep.subr.bf16.mxu0 0
      %427 = vmatpush2.bf16.msra.mxu0 0
      %428 = vmatprep.subr.bf16.mxu0 0
      %429 = vmatpush2.bf16.msra.mxu0 0
      %430 = vmatprep.subr.bf16.mxu0 0
      %431 = vmatpush2.bf16.msra.mxu0 0
      %432 = vmatprep.subr.bf16.mxu0 0
      %433 = vmatpush2.bf16.msra.mxu0 0
      %434 = vmatprep.subr.bf16.mxu0 0
      %435 = vmatpush2.bf16.msra.mxu0 0
      %436 = vmatprep.subr.bf16.mxu0 0
      %437 = vmatpush2.bf16.msra.mxu0 0
      %438 = vmatprep.subr.bf16.mxu0 0
      %439 = vmatpush2.bf16.msra.mxu0 0
      %440 = vmatprep.mubr.bf16.mxu0 0
      %441 = vmatmul.mubr.bf16.gmra.mxu0 %v361
      %v442 = vpop.f32.mrf.mxu0
      %v443 = vadd.f32 %v345, %v442
      %v444 = vpop.f32.mrf.mxu0
      %v445 = vpop.f32.mrf.mxu0
      %v446 = vadd.f32 %v345, %v445
      %v447 = vpop.f32.mrf.mxu0
      %448 = vmatprep.mubr.bf16.mxu0 0
      %449 = vmatmul.mubr.bf16.gmra.mxu0 %v364
      %v450 = vpop.f32.mrf.mxu0
      %v451 = vadd.f32 %v345, %v450
      %v452 = vpop.f32.mrf.mxu0
      %v453 = vpop.f32.mrf.mxu0
      %v454 = vadd.f32 %v345, %v453
      %v455 = vpop.f32.mrf.mxu0
      %456 = vmatprep.mubr.bf16.mxu0 0
      %457 = vmatmul.mubr.bf16.gmra.mxu0 %v367
      %v458 = vpop.f32.mrf.mxu0
      %v459 = vadd.f32 %v345, %v458
      %v460 = vpop.f32.mrf.mxu0
      %v461 = vpop.f32.mrf.mxu0
      %v462 = vadd.f32 %v345, %v461
      %v463 = vpop.f32.mrf.mxu0
      %464 = vmatprep.mubr.bf16.mxu0 0
      %465 = vmatmul.mubr.bf16.gmra.mxu0 %v370
      %v466 = vpop.f32.mrf.mxu0
      %v467 = vadd.f32 %v345, %v466
      %v468 = vpop.f32.mrf.mxu0
      %v469 = vpop.f32.mrf.mxu0
      %v470 = vadd.f32 %v345, %v469
      %v471 = vpop.f32.mrf.mxu0
      %472 = vmatprep.mubr.bf16.mxu0 0
      %473 = vmatmul.mubr.bf16.gmra.mxu0 %v373
      %v474 = vpop.f32.mrf.mxu0
      %v475 = vadd.f32 %v345, %v474
      %v476 = vpop.f32.mrf.mxu0
      %v477 = vpop.f32.mrf.mxu0
      %v478 = vadd.f32 %v345, %v477
      %v479 = vpop.f32.mrf.mxu0
      %480 = vmatprep.mubr.bf16.mxu0 0
      %481 = vmatmul.mubr.bf16.gmra.mxu0 %v376
      %v482 = vpop.f32.mrf.mxu0
      %v483 = vadd.f32 %v345, %v482
      %v484 = vpop.f32.mrf.mxu0
      %v485 = vpop.f32.mrf.mxu0
      %v486 = vadd.f32 %v345, %v485
      %v487 = vpop.f32.mrf.mxu0
      %488 = vmatprep.mubr.bf16.mxu0 0
      %489 = vmatmul.mubr.bf16.gmra.mxu0 %v379
      %v490 = vpop.f32.mrf.mxu0
      %v491 = vadd.f32 %v345, %v490
      %v492 = vpop.f32.mrf.mxu0
      %v493 = vpop.f32.mrf.mxu0
      %v494 = vadd.f32 %v345, %v493
      %v495 = vpop.f32.mrf.mxu0
      %496 = vmatprep.mubr.bf16.mxu0 0
      %497 = vmatmul.mubr.bf16.gmra.mxu0 %v382
      %v498 = vpop.f32.mrf.mxu0
      %v499 = vadd.f32 %v345, %v498
      %v500 = vpop.f32.mrf.mxu0
      %v501 = vpop.f32.mrf.mxu0
      %v502 = vadd.f32 %v345, %v501
      %v503 = vpop.f32.mrf.mxu0
      %504 = vmatprep.mubr.bf16.mxu0 0
      %505 = vmatmul.mubr.bf16.gmra.mxu0 %v385
      %v506 = vpop.f32.mrf.mxu0
      %v507 = vadd.f32 %v345, %v506
      %v508 = vpop.f32.mrf.mxu0
      %v509 = vpop.f32.mrf.mxu0
      %v510 = vadd.f32 %v345, %v509
      %v511 = vpop.f32.mrf.mxu0
      %512 = vmatprep.mubr.bf16.mxu0 0
      %513 = vmatmul.mubr.bf16.gmra.mxu0 %v388
      %v514 = vpop.f32.mrf.mxu0
      %v515 = vadd.f32 %v345, %v514
      %v516 = vpop.f32.mrf.mxu0
      %v517 = vpop.f32.mrf.mxu0
      %v518 = vadd.f32 %v345, %v517
      %v519 = vpop.f32.mrf.mxu0
      %520 = vmatprep.mubr.bf16.mxu0 0
      %521 = vmatmul.mubr.bf16.gmra.mxu0 %v391
      %v522 = vpop.f32.mrf.mxu0
      %v523 = vadd.f32 %v345, %v522
      %v524 = vpop.f32.mrf.mxu0
      %v525 = vpop.f32.mrf.mxu0
      %v526 = vadd.f32 %v345, %v525
      %v527 = vpop.f32.mrf.mxu0
      %528 = vmatprep.mubr.bf16.mxu0 0
      %529 = vmatmul.mubr.bf16.gmra.mxu0 %v394
      %v530 = vpop.f32.mrf.mxu0
      %v531 = vadd.f32 %v345, %v530
      %v532 = vpop.f32.mrf.mxu0
      %v533 = vpop.f32.mrf.mxu0
      %v534 = vadd.f32 %v345, %v533
      %v535 = vpop.f32.mrf.mxu0
      %536 = vmatprep.mubr.bf16.mxu0 0
      %537 = vmatmul.mubr.bf16.gmra.mxu0 %v397
      %v538 = vpop.f32.mrf.mxu0
      %v539 = vadd.f32 %v345, %v538
      %v540 = vpop.f32.mrf.mxu0
      %v541 = vpop.f32.mrf.mxu0
      %v542 = vadd.f32 %v345, %v541
      %v543 = vpop.f32.mrf.mxu0
      %544 = vmatprep.mubr.bf16.mxu0 0
      %545 = vmatmul.mubr.bf16.gmra.mxu0 %v400
      %v546 = vpop.f32.mrf.mxu0
      %v547 = vadd.f32 %v345, %v546
      %v548 = vpop.f32.mrf.mxu0
      %v549 = vpop.f32.mrf.mxu0
      %v550 = vadd.f32 %v345, %v549
      %v551 = vpop.f32.mrf.mxu0
      %552 = vmatprep.mubr.bf16.mxu0 0
      %553 = vmatmul.mubr.bf16.gmra.mxu0 %v403
      %v554 = vpop.f32.mrf.mxu0
      %v555 = vadd.f32 %v345, %v554
      %v556 = vpop.f32.mrf.mxu0
      %v557 = vpop.f32.mrf.mxu0
      %v558 = vadd.f32 %v345, %v557
      %v559 = vpop.f32.mrf.mxu0
      %560 = vmatprep.mubr.bf16.mxu0 0
      %561 = vmatmul.mubr.bf16.gmra.mxu0 %v406
      %v562 = vpop.f32.mrf.mxu0
      %v563 = vadd.f32 %v345, %v562
      %v564 = vpop.f32.mrf.mxu0
      %v565 = vpop.f32.mrf.mxu0
      %v566 = vadd.f32 %v345, %v565
      %v567 = vpop.f32.mrf.mxu0
      %568 = vdwg.mxu0
      %v569 = vmul.f32 %v443, %v507
      %v570 = vmul.f32 %v446, %v510
      %v571 = vmul.f32 %v451, %v515
      %v572 = vmul.f32 %v454, %v518
      %v573 = vmul.f32 %v459, %v523
      %v574 = vmul.f32 %v462, %v526
      %v575 = vmul.f32 %v467, %v531
      %v576 = vmul.f32 %v470, %v534
      %v577 = vmul.f32 %v475, %v539
      %v578 = vmul.f32 %v478, %v542
      %v579 = vmul.f32 %v483, %v547
      %v580 = vmul.f32 %v486, %v550
      %v581 = vmul.f32 %v491, %v555
      %v582 = vmul.f32 %v494, %v558
      %v583 = vmul.f32 %v499, %v563
      %v584 = vmul.f32 %v502, %v566
      %585 = vadd.xlane.f32.xlu0 %v569
      %v586 = vpop.xlane.xlu0 %585
      %587 = vadd.xlane.f32.xlu0 %v570
      %v588 = vpop.xlane.xlu0 %587
      %589 = vadd.xlane.f32.xlu0 %v571
      %v590 = vpop.xlane.xlu0 %589
      %591 = vadd.xlane.f32.xlu0 %v572
      %v592 = vpop.xlane.xlu0 %591
      %593 = vadd.xlane.f32.xlu0 %v573
      %v594 = vpop.xlane.xlu0 %593
      %595 = vadd.xlane.f32.xlu0 %v574
      %v596 = vpop.xlane.xlu0 %595
      %597 = vadd.xlane.f32.xlu0 %v575
      %v598 = vpop.xlane.xlu0 %597
      %599 = vadd.xlane.f32.xlu0 %v576
      %v600 = vpop.xlane.xlu0 %599
      %601 = vadd.xlane.f32.xlu0 %v577
      %v602 = vpop.xlane.xlu0 %601
      %603 = vadd.xlane.f32.xlu0 %v578
      %v604 = vpop.xlane.xlu0 %603
      %605 = vadd.xlane.f32.xlu0 %v579
      %v606 = vpop.xlane.xlu0 %605
      %607 = vadd.xlane.f32.xlu0 %v580
      %v608 = vpop.xlane.xlu0 %607
      %609 = vadd.xlane.f32.xlu0 %v581
      %v610 = vpop.xlane.xlu0 %609
      %611 = vadd.xlane.f32.xlu0 %v582
      %v612 = vpop.xlane.xlu0 %611
      %613 = vadd.xlane.f32.xlu0 %v583
      %v614 = vpop.xlane.xlu0 %613
      %615 = vadd.xlane.f32.xlu0 %v584
      %v616 = vpop.xlane.xlu0 %615
      %v617 = vsub.f32 0.0, %v586
      %v618 = vsub.f32 0.0, %v588
      %v619 = vsub.f32 0.0, %v590
      %v620 = vsub.f32 0.0, %v592
      %v621 = vsub.f32 0.0, %v594
      %v622 = vsub.f32 0.0, %v596
      %v623 = vsub.f32 0.0, %v598
      %v624 = vsub.f32 0.0, %v600
      %v625 = vsub.f32 0.0, %v602
      %v626 = vsub.f32 0.0, %v604
      %v627 = vsub.f32 0.0, %v606
      %v628 = vsub.f32 0.0, %v608
      %v629 = vsub.f32 0.0, %v610
      %v630 = vsub.f32 0.0, %v612
      %v631 = vsub.f32 0.0, %v614
      %v632 = vsub.f32 0.0, %v616
      %v633 = vmul.f32 %v617, 1.442695
      %v634 = vpow.pop %v633
      %v635 = vmul.f32 %v618, 1.442695
      %v636 = vpow.pop %v635
      %v637 = vmul.f32 %v619, 1.442695
      %v638 = vpow.pop %v637
      %v639 = vmul.f32 %v620, 1.442695
      %v640 = vpow.pop %v639
      %v641 = vmul.f32 %v621, 1.442695
      %v642 = vpow.pop %v641
      %v643 = vmul.f32 %v622, 1.442695
      %v644 = vpow.pop %v643
      %v645 = vmul.f32 %v623, 1.442695
      %v646 = vpow.pop %v645
      %v647 = vmul.f32 %v624, 1.442695
      %v648 = vpow.pop %v647
      %v649 = vmul.f32 %v625, 1.442695
      %v650 = vpow.pop %v649
      %v651 = vmul.f32 %v626, 1.442695
      %v652 = vpow.pop %v651
      %v653 = vmul.f32 %v627, 1.442695
      %v654 = vpow.pop %v653
      %v655 = vmul.f32 %v628, 1.442695
      %v656 = vpow.pop %v655
      %v657 = vmul.f32 %v629, 1.442695
      %v658 = vpow.pop %v657
      %v659 = vmul.f32 %v630, 1.442695
      %v660 = vpow.pop %v659
      %v661 = vmul.f32 %v631, 1.442695
      %v662 = vpow.pop %v661
      %v663 = vmul.f32 %v632, 1.442695
      %v664 = vpow.pop %v663
      %v665 = vadd.f32 %v634, 1.0
      %v666 = vadd.f32 %v636, 1.0
      %v667 = vadd.f32 %v638, 1.0
      %v668 = vadd.f32 %v640, 1.0
      %v669 = vadd.f32 %v642, 1.0
      %v670 = vadd.f32 %v644, 1.0
      %v671 = vadd.f32 %v646, 1.0
      %v672 = vadd.f32 %v648, 1.0
      %v673 = vadd.f32 %v650, 1.0
      %v674 = vadd.f32 %v652, 1.0
      %v675 = vadd.f32 %v654, 1.0
      %v676 = vadd.f32 %v656, 1.0
      %v677 = vadd.f32 %v658, 1.0
      %v678 = vadd.f32 %v660, 1.0
      %v679 = vadd.f32 %v662, 1.0
      %v680 = vadd.f32 %v664, 1.0
      %v681 = vrcp.pop %v665
      %v682 = vrcp.pop %v666
      %v683 = vrcp.pop %v667
      %v684 = vrcp.pop %v668
      %v685 = vrcp.pop %v669
      %v686 = vrcp.pop %v670
      %v687 = vrcp.pop %v671
      %v688 = vrcp.pop %v672
      %v689 = vrcp.pop %v673
      %v690 = vrcp.pop %v674
      %v691 = vrcp.pop %v675
      %v692 = vrcp.pop %v676
      %v693 = vrcp.pop %v677
      %v694 = vrcp.pop %v678
      %v695 = vrcp.pop %v679
      %v696 = vrcp.pop %v680
      %vm697 = vcmask 7168
      %698 = vst.msk [vmem:[%s221] sm:$0xff] %vm697, %v681
      %699 = vst.msk [vmem:[%s221 + $0x8] sm:$0xff] %vm697, %v682
      %700 = vst.msk [vmem:[%s221 + $0x10] sm:$0xff] %vm697, %v683
      %701 = vst.msk [vmem:[%s221 + $0x18] sm:$0xff] %vm697, %v684
      %702 = vst.msk [vmem:[%s221 + $0x20] sm:$0xff] %vm697, %v685
      %703 = vst.msk [vmem:[%s221 + $0x28] sm:$0xff] %vm697, %v686
      %704 = vst.msk [vmem:[%s221 + $0x30] sm:$0xff] %vm697, %v687
      %705 = vst.msk [vmem:[%s221 + $0x38] sm:$0xff] %vm697, %v688
      %706 = vst.msk [vmem:[%s221 + $0x40] sm:$0xff] %vm697, %v689
      %707 = vst.msk [vmem:[%s221 + $0x48] sm:$0xff] %vm697, %v690
      %708 = vst.msk [vmem:[%s221 + $0x50] sm:$0xff] %vm697, %v691
      %709 = vst.msk [vmem:[%s221 + $0x58] sm:$0xff] %vm697, %v692
      %710 = vst.msk [vmem:[%s221 + $0x60] sm:$0xff] %vm697, %v693
      %711 = vst.msk [vmem:[%s221 + $0x68] sm:$0xff] %vm697, %v694
      %712 = vst.msk [vmem:[%s221 + $0x70] sm:$0xff] %vm697, %v695
      %713 = vst.msk [vmem:[%s221 + $0x78] sm:$0xff] %vm697, %v696
      %s714 = smul.u32 16, %s15
      %p715 = scmp.lt.s32.totalorder %s714, 31
      %s716 = scalar_select %p715, %s714, 31
      %s717 = smul.addr %s716, 8
      %s718 = scalar_lea.vmem %s4, %s717
      // Predicated region
      $region37: #{tpu_custom_call.1} parent=35 // pred_check
        %p719 = pneg %p127
      $region38: #{tpu_custom_call.1} parent=35 // pred_check_branch
        %721 = sbr.rel (%p719) target = $region40
      $region39: #{tpu_custom_call.1} parent=35 // pred_region
        %s722 = smul.u32 16, %s15
      $region40: #{tpu_custom_call.1} parent=35 // pred_fallthru
        _
    $region36: #{tpu_custom_call.1} parent=5 // pred_fallthru
      _
    %p723 = scmp.le.s32.totalorder 2, %s10
    // Predicated region
    $region41: #{tpu_custom_call.1} parent=5 // pred_check
      %p724 = pneg %p723
    $region42: #{tpu_custom_call.1} parent=5 // pred_check_branch
      %726 = sbr.rel (%p724) target = $region44
    $region43: #{tpu_custom_call.1} parent=5 // pred_region
      %s727 = ssub.s32 %s10, 2
      // Predicated region
      $region45: #{tpu_custom_call.1} parent=43 // pred_check
        %p728 = pneg %p133
      $region46: #{tpu_custom_call.1} parent=43 // pred_check_branch
        %730 = sbr.rel (%p728) target = $region48
      $region47: #{tpu_custom_call.1} parent=43 // pred_region
        %s731 = smul.u32 16, %s16
        %p732 = scmp.lt.s32.totalorder %s731, 31
        %s733 = scalar_select %p732, %s731, 31
        %s734 = smul.addr %s733, 8
        %s735 = scalar_lea.vmem %s4, %s734
      $region48: #{tpu_custom_call.1} parent=43 // pred_fallthru
        _
    $region44: #{tpu_custom_call.1} parent=5 // pred_fallthru
      _
  $region6: #{tpu_custom_call.1} parent=0 // loop_footer
    %s14 = sadd.s32 1, %s10
  $region7: #{tpu_custom_call.1} parent=0 // loop_footer_branch
    %9 = sbr.rel target = $region3
  $region8: #{tpu_custom_call.1} parent=0 // loop_exit
    _

</llo_original>
